<compile_context>
chip_gen: v7x
topology: tpu7x:2x2x1
jax: 0.10.0
libtpu: 0.0.40
codegen_flags: <defaults>
</compile_context>

<pallas_src>
import functools
import warnings

import jax
import jax.numpy as jnp
from jax.experimental import pallas as pl
from jax.experimental.pallas import tpu as pltpu

_SUBLANES = 8            # f32 sublane height
_LANES = 128             # vreg lane width
_OUT_LANES = 8           # fc_1 outputs padded to this many lanes (>= n_out=2)
_TILE_VMEM_BUDGET = 4 * 1024 * 1024     # budget for double-buffered x/out tiles
_MIN_ROWS_FOR_CORE_SPLIT = 1024         # force >=2 grid steps above this (v7x 2 TCs)


def _round_up(x, m):
    return (x + m - 1) // m * m


def _divisors(n):
    divs = []
    i = 1
    while i * i <= n:
        if n % i == 0:
            divs.append(i)
            if i != n // i:
                divs.append(n // i)
        i += 1
    return sorted(divs)


# --------------------------------------------------------------------------- #
# Kernel
# --------------------------------------------------------------------------- #
def _discriminator_kernel(x_ref, w0_ref, b0_ref, g_ref, beta_ref,
                          w1_ref, b1_ref, o_ref):
    # fc_0 on the MXU.  Matmul operand dtype follows the prepared weight dtype
    # (f32 by default, bf16 if prepare_params(..., matmul_dtype=bf16)); the
    # accumulation is always f32.
    w0 = w0_ref[...]
    x = x_ref[...].astype(w0.dtype)
    h = jnp.dot(x, w0, preferred_element_type=jnp.float32) + b0_ref[...]

    # LayerNorm over the feature axis (eps=1e-5, affine), in f32.
    # Single-pass stats: sum and sum-of-squares have no serial dependency, so
    # the two cross-lane reductions can overlap on the XLUs.
    inv_f = 1.0 / h.shape[-1]
    mean = jnp.sum(h, axis=-1, keepdims=True) * inv_f
    mean_sq = jnp.sum(h * h, axis=-1, keepdims=True) * inv_f
    var = jnp.maximum(mean_sq - mean * mean, 0.0)   # clamp tiny negative rounding
    h = (h - mean) * jax.lax.rsqrt(var + 1e-5)
    h = h * g_ref[...] + beta_ref[...]

    # ReLU
    h = jnp.maximum(h, 0.0)

    # fc_1 into the lightly padded (8-lane) output block: only 8 lanes per row
    # are written back to HBM (16x fewer bytes than a 128-lane slab), and the
    # block spans the full array width so the HBM writeback stays contiguous.
    w1 = w1_ref[...]
    out = jnp.dot(h.astype(w1.dtype), w1, preferred_element_type=jnp.float32)
    out = out + b1_ref[...]
    o_ref[...] = out.astype(o_ref.dtype)


# --------------------------------------------------------------------------- #
# Specs / sizing helpers
# --------------------------------------------------------------------------- #
def _const_spec(shape):
    """BlockSpec for a block that is identical at every grid step.

    Single-buffered (pipeline_mode=pl.Buffered(1)): double buffering a constant
    block is pure VMEM waste.  If this JAX version lacks Buffered, warn loudly
    (silently doubling W0/W1 VMEM is exactly what hurts v7x's 64 MiB VMEM).
    """
    try:
        return pl.BlockSpec(shape, lambda i: (0, 0),
                            pipeline_mode=pl.Buffered(1))
    except (AttributeError, TypeError) as e:   # pragma: no cover
        warnings.warn(
            "pl.Buffered(1) unavailable (%s); constant weight blocks will be "
            "double-buffered, doubling their VMEM footprint." % (e,))
        return pl.BlockSpec(shape, lambda i: (0, 0))


def _choose_block_b(B, F, n_pad, x_itemsize, align):
    """Pick the batch tile from a VMEM budget, preferring a tile that divides B
    exactly (no wrapper-side padding pass over x) and, for large B, a tile that
    gives >= 2 grid steps so the parallel axis can shard across v7x's 2 cores."""
    per_row = 2 * (_round_up(F, _LANES) * x_itemsize + _round_up(n_pad, _LANES) * 4)
    cap = max(align, (_TILE_VMEM_BUDGET // per_row) // align * align)

    if B % align == 0:
        m = B // align
        candidates = sorted(d * align for d in _divisors(m) if d * align <= cap)
        best = candidates[-1]
        if B >= _MIN_ROWS_FOR_CORE_SPLIT:
            split = [blk for blk in candidates if m // (blk // align) >= 2]
            # only take the multi-step tile if it doesn't shrink tiles >4x
            if split and split[-1] * 4 >= best:
                best = split[-1]
        return best, B          # divides B exactly -> no padding of x

    # ragged / unaligned batch: small pad of the tail only
    blk = max(align, min(_round_up(B, align), cap))
    return blk, _round_up(B, blk)


def _vmem_limit_bytes(block_b, F, n_pad, x_itemsize, w_itemsize):
    """Footprint-based VMEM limit (tiles double-buffered, weights counted twice
    for safety in case Buffered(1) falls back, f32 intermediates + headroom)."""
    f_lanes = _round_up(F, _LANES)
    p_lanes = _round_up(n_pad, _LANES)
    tiles = 2 * block_b * (f_lanes * x_itemsize + p_lanes * 4)
    consts = 2 * (F * f_lanes * w_itemsize + F * p_lanes * w_itemsize
                  + 5 * _LANES * 4)
    interm = 6 * block_b * f_lanes * 4
    need = int(1.5 * (tiles + consts + interm)) + (2 << 20)
    # stay under the smallest physical VMEM across generations (v7x: 64 MiB)
    return max(8 << 20, min(need, 60 << 20))


# --------------------------------------------------------------------------- #
# Parameter prep (one-time; hoisted out of the per-call forward)
# --------------------------------------------------------------------------- #
def prepare_params(w0, b0, gamma, beta, w1, b1, *, matmul_dtype=None):
    """Reshape vectors to (1, F), zero-pad fc_1 to _OUT_LANES output lanes, keep
    the LayerNorm / bias parameters in f32, and optionally cast the matmul
    weights (W0, W1) to bf16 for MXU throughput.  Returns (params, n_out)."""
    F = w0.shape[0]
    n_out = w1.shape[1]
    assert w0.shape == (F, F) and w1.shape[0] == F

    b0 = jnp.reshape(b0, (1, F)).astype(jnp.float32)
    gamma = jnp.reshape(gamma, (1, F)).astype(jnp.float32)
    beta = jnp.reshape(beta, (1, F)).astype(jnp.float32)

    n_pad = max(_OUT_LANES, _round_up(n_out, _OUT_LANES))
    w1_p = jnp.zeros((F, n_pad), w1.dtype).at[:, :n_out].set(w1)
    b1_p = (jnp.zeros((1, n_pad), jnp.float32)
            .at[:, :n_out].set(jnp.reshape(b1, (1, n_out)).astype(jnp.float32)))

    if matmul_dtype is not None:
        w0 = w0.astype(matmul_dtype)
        w1_p = w1_p.astype(matmul_dtype)

    return (w0, b0, gamma, beta, w1_p, b1_p), n_out


# --------------------------------------------------------------------------- #
# Forward
# --------------------------------------------------------------------------- #
@functools.partial(jax.jit, static_argnames=("n_out", "block_b"))
def discriminator_forward(x, params, *, n_out=2, block_b=None):
    w0, b0, gamma, beta, w1_p, b1_p = params
    B, F = x.shape
    n_pad = w1_p.shape[1]
    x_isz = jnp.dtype(x.dtype).itemsize
    w_isz = jnp.dtype(w0.dtype).itemsize
    # dtype-aware sublane alignment: 8 (f32), 16 (bf16), 32 (int8/fp8)
    align = max(_SUBLANES, 32 // x_isz)

    if block_b is None:
        block_b, B_pad = _choose_block_b(B, F, n_pad, x_isz, align)
    else:
        block_b = max(align, _round_up(block_b, align))
        B_pad = _round_up(B, block_b)

    if B_pad != B:
        # only reached for ragged/unaligned batches; aligned batches pick a
        # tile that divides B so x is never copied through HBM just to pad it.
        x = jnp.pad(x, ((0, B_pad - B), (0, 0)))
    grid = (B_pad // block_b,)

    cost = pl.CostEstimate(
        flops=2 * B_pad * F * F + 2 * B_pad * F * n_pad + 10 * B_pad * F,
        transcendentals=B_pad,                      # one rsqrt per row
        bytes_accessed=(B_pad * F * x_isz + B_pad * n_pad * x_isz
                        + (F * F + F * n_pad) * w_isz + (3 * F + n_pad) * 4),
    )

    out_padded = pl.pallas_call(
        _discriminator_kernel,
        out_shape=jax.ShapeDtypeStruct((B_pad, n_pad), x.dtype),
        grid=grid,
        in_specs=[
            pl.BlockSpec((block_b, F), lambda i: (i, 0)),   # x tile (pipelined)
            _const_spec((F, F)),                            # W0 (resident)
            _const_spec((1, F)),                            # b0
            _const_spec((1, F)),                            # gamma
            _const_spec((1, F)),                            # beta
            _const_spec((F, n_pad)),                        # W1 (8-lane padded)
            _const_spec((1, n_pad)),                        # b1 (8-lane padded)
        ],
        out_specs=pl.BlockSpec((block_b, n_pad), lambda i: (i, 0)),
        compiler_params=pltpu.CompilerParams(
            dimension_semantics=("parallel",),
            vmem_limit_bytes=_vmem_limit_bytes(block_b, F, n_pad, x_isz, w_isz)),
        cost_estimate=cost,
    )(x, w0, b0, gamma, beta, w1_p, b1_p)

    return out_padded[:B, :n_out]


# --------------------------------------------------------------------------- #
# Init + reference
# --------------------------------------------------------------------------- #
def init_params(key, n_feature, dtype=jnp.float32):
    """Deterministic synthetic init matching nn.Linear / nn.LayerNorm shapes."""
    k0, k1, k2, k3 = jax.random.split(key, 4)
    bound0 = 1.0 / jnp.sqrt(n_feature)
    # nn.Linear stores weight as (out, in); we pre-transpose to (in, out).
    w0 = jax.random.uniform(k0, (n_feature, n_feature), dtype, -bound0, bound0)
    b0 = jax.random.uniform(k1, (1, n_feature), dtype, -bound0, bound0)
    gamma = jnp.ones((1, n_feature), dtype)   # LayerNorm weight
    beta = jnp.zeros((1, n_feature), dtype)   # LayerNorm bias
    w1 = jax.random.uniform(k2, (n_feature, 2), dtype, -bound0, bound0)
    b1 = jax.random.uniform(k3, (1, 2), dtype, -bound0, bound0)
    return w0, b0, gamma, beta, w1, b1


def reference_forward(x, w0, b0, gamma, beta, w1, b1):
    """Pure-JAX reference mirroring the PyTorch module semantics."""
    h = x @ w0 + b0
    mean = jnp.mean(h, axis=-1, keepdims=True)
    var = jnp.mean((h - mean) ** 2, axis=-1, keepdims=True)
    h = (h - mean) / jnp.sqrt(var + 1e-5) * gamma + beta
    h = jnp.maximum(h, 0.0)
    return h @ w1 + b1


if __name__ == "__main__":
    n_feature = 32
    batch = 16

    key = jax.random.PRNGKey(0)
    kx, kp = jax.random.split(key)
    x = jax.random.normal(kx, (batch, n_feature), jnp.float32)
    raw_params = init_params(kp, n_feature)
    ref = reference_forward(x, *raw_params)

    params, n_out = prepare_params(*raw_params)

    # Default path: whole batch in one MXU-aligned tile, no wrapper padding.
    out = jax.block_until_ready(discriminator_forward(x, params, n_out=n_out))
    assert out.shape == (batch, 2), out.shape
    assert jnp.allclose(out, ref, atol=1e-4, rtol=1e-4), "mismatch (default tile)"

    # Multi-step grid path (exercises batch tiling across grid steps).
    out2 = jax.block_until_ready(
        discriminator_forward(x, params, n_out=n_out, block_b=8))
    assert jnp.allclose(out2, ref, atol=1e-4, rtol=1e-4), "mismatch (block_b=8)"

    # Ragged batch (exercises the pad-the-tail fallback path).
    x_ragged = x[:13]
    out3 = jax.block_until_ready(
        discriminator_forward(x_ragged, params, n_out=n_out))
    assert out3.shape == (13, 2), out3.shape
    assert jnp.allclose(out3, ref[:13], atol=1e-4, rtol=1e-4), "mismatch (ragged B)"

    # Optional bf16-MXU path (main lever for large n_feature on v6e/v7x).
    params_bf16, _ = prepare_params(*raw_params, matmul_dtype=jnp.bfloat16)
    out4 = jax.block_until_ready(
        discriminator_forward(x, params_bf16, n_out=n_out))
    assert out4.shape == (batch, 2), out4.shape
    assert jnp.all(jnp.isfinite(out4))
    assert jnp.allclose(out4, ref, atol=5e-2, rtol=5e-2), "mismatch (bf16 MXU)"

    print("KERNEL_OK")
</pallas_src>

<mosaic_0001>
module attributes {stable_mosaic.version = 11 : i64} {
  func.func @_discriminator_kernel(%arg0: i32, %arg1: memref<16x32xf32, #tpu.memory_space<vmem>>, %arg2: memref<32x32xf32, #tpu.memory_space<vmem>>, %arg3: memref<1x32xf32, #tpu.memory_space<vmem>>, %arg4: memref<1x32xf32, #tpu.memory_space<vmem>>, %arg5: memref<1x32xf32, #tpu.memory_space<vmem>>, %arg6: memref<32x8xf32, #tpu.memory_space<vmem>>, %arg7: memref<1x8xf32, #tpu.memory_space<vmem>>, %arg8: memref<16x8xf32, #tpu.memory_space<vmem>>) attributes {dimension_semantics = [#tpu.dimension_semantics<parallel>], iteration_bounds = array<i64: 1>, scalar_prefetch = 0 : i64, scratch_operands = 0 : i64, tpu.core_type = #tpu.core_type<tc>, window_params = [{transform_indices = @transform_0, window_bounds = array<i64: 16, 32>}, {pipeline_mode = #tpu.pipeline_mode<synchronous>, transform_indices = @transform_1, window_bounds = array<i64: 32, 32>}, {pipeline_mode = #tpu.pipeline_mode<synchronous>, transform_indices = @transform_2, window_bounds = array<i64: 1, 32>}, {pipeline_mode = #tpu.pipeline_mode<synchronous>, transform_indices = @transform_3, window_bounds = array<i64: 1, 32>}, {pipeline_mode = #tpu.pipeline_mode<synchronous>, transform_indices = @transform_4, window_bounds = array<i64: 1, 32>}, {pipeline_mode = #tpu.pipeline_mode<synchronous>, transform_indices = @transform_5, window_bounds = array<i64: 32, 8>}, {pipeline_mode = #tpu.pipeline_mode<synchronous>, transform_indices = @transform_6, window_bounds = array<i64: 1, 8>}, {transform_indices = @transform_7, window_bounds = array<i64: 16, 8>}]} {
    %c0 = arith.constant 0 : index
    %c0_0 = arith.constant 0 : index
    %0 = vector.load %arg2[%c0, %c0_0] : memref<32x32xf32, #tpu.memory_space<vmem>>, vector<32x32xf32>
    %c0_1 = arith.constant 0 : index
    %c0_2 = arith.constant 0 : index
    %1 = vector.load %arg1[%c0_1, %c0_2] : memref<16x32xf32, #tpu.memory_space<vmem>>, vector<16x32xf32>
    %cst = arith.constant dense<0.000000e+00> : vector<16x32xf32>
    %2 = tpu.matmul %1, %0, %cst {dimension_numbers = #tpu.dot_dimension_numbers<[1], [0], [0], [1], [0, 0, 1, 1], [], []>} : vector<16x32xf32>, vector<32x32xf32>, vector<16x32xf32> -> vector<16x32xf32>
    %c0_3 = arith.constant 0 : index
    %c0_4 = arith.constant 0 : index
    %3 = vector.load %arg3[%c0_3, %c0_4] : memref<1x32xf32, #tpu.memory_space<vmem>>, vector<1x32xf32>
    %4 = vector.broadcast %3 : vector<1x32xf32> to vector<16x32xf32>
    %5 = arith.addf %2, %4 : vector<16x32xf32>
    %cst_5 = arith.constant dense<0.000000e+00> : vector<16xf32>
    %6 = vector.multi_reduction <add>, %5, %cst_5 [1] : vector<16x32xf32> to vector<16xf32>
    %7 = vector.shape_cast %6 : vector<16xf32> to vector<16x1xf32>
    %cst_6 = arith.constant 3.125000e-02 : f32
    %8 = vector.broadcast %cst_6 : f32 to vector<16x1xf32>
    %9 = arith.mulf %7, %8 : vector<16x1xf32>
    %10 = arith.mulf %5, %5 : vector<16x32xf32>
    %cst_7 = arith.constant dense<0.000000e+00> : vector<16xf32>
    %11 = vector.multi_reduction <add>, %10, %cst_7 [1] : vector<16x32xf32> to vector<16xf32>
    %12 = vector.shape_cast %11 : vector<16xf32> to vector<16x1xf32>
    %cst_8 = arith.constant 3.125000e-02 : f32
    %13 = vector.broadcast %cst_8 : f32 to vector<16x1xf32>
    %14 = arith.mulf %12, %13 : vector<16x1xf32>
    %15 = arith.mulf %9, %9 : vector<16x1xf32>
    %16 = arith.subf %14, %15 : vector<16x1xf32>
    %cst_9 = arith.constant 0.000000e+00 : f32
    %17 = vector.broadcast %cst_9 : f32 to vector<16x1xf32>
    %18 = arith.maximumf %16, %17 : vector<16x1xf32>
    %19 = vector.broadcast %9 : vector<16x1xf32> to vector<16x32xf32>
    %20 = arith.subf %5, %19 : vector<16x32xf32>
    %cst_10 = arith.constant 9.99999974E-6 : f32
    %21 = vector.broadcast %cst_10 : f32 to vector<16x1xf32>
    %22 = arith.addf %18, %21 : vector<16x1xf32>
    %23 = math.rsqrt %22 : vector<16x1xf32>
    %24 = vector.broadcast %23 : vector<16x1xf32> to vector<16x32xf32>
    %25 = arith.mulf %20, %24 : vector<16x32xf32>
    %c0_11 = arith.constant 0 : index
    %c0_12 = arith.constant 0 : index
    %26 = vector.load %arg4[%c0_11, %c0_12] : memref<1x32xf32, #tpu.memory_space<vmem>>, vector<1x32xf32>
    %27 = vector.broadcast %26 : vector<1x32xf32> to vector<16x32xf32>
    %28 = arith.mulf %25, %27 : vector<16x32xf32>
    %c0_13 = arith.constant 0 : index
    %c0_14 = arith.constant 0 : index
    %29 = vector.load %arg5[%c0_13, %c0_14] : memref<1x32xf32, #tpu.memory_space<vmem>>, vector<1x32xf32>
    %30 = vector.broadcast %29 : vector<1x32xf32> to vector<16x32xf32>
    %31 = arith.addf %28, %30 : vector<16x32xf32>
    %cst_15 = arith.constant 0.000000e+00 : f32
    %32 = vector.broadcast %cst_15 : f32 to vector<16x32xf32>
    %33 = arith.maximumf %31, %32 : vector<16x32xf32>
    %c0_16 = arith.constant 0 : index
    %c0_17 = arith.constant 0 : index
    %34 = vector.load %arg6[%c0_16, %c0_17] : memref<32x8xf32, #tpu.memory_space<vmem>>, vector<32x8xf32>
    %cst_18 = arith.constant dense<0.000000e+00> : vector<16x8xf32>
    %35 = tpu.matmul %33, %34, %cst_18 {dimension_numbers = #tpu.dot_dimension_numbers<[1], [0], [0], [1], [0, 0, 1, 1], [], []>} : vector<16x32xf32>, vector<32x8xf32>, vector<16x8xf32> -> vector<16x8xf32>
    %c0_19 = arith.constant 0 : index
    %c0_20 = arith.constant 0 : index
    %36 = vector.load %arg7[%c0_19, %c0_20] : memref<1x8xf32, #tpu.memory_space<vmem>>, vector<1x8xf32>
    %37 = vector.broadcast %36 : vector<1x8xf32> to vector<16x8xf32>
    %38 = arith.addf %35, %37 : vector<16x8xf32>
    %c0_21 = arith.constant 0 : index
    %c0_22 = arith.constant 0 : index
    %39 = vector.load %arg8[%c0_21, %c0_22] : memref<16x8xf32, #tpu.memory_space<vmem>>, vector<16x8xf32>
    tpu.vector_store %arg8[%c0_21, %c0_22], %38 {strides = array<i32>} : memref<16x8xf32, #tpu.memory_space<vmem>>, vector<16x8xf32>,
    return
  }
  func.func @transform_0(%arg0: i32) -> (i32, i32) {
    %c0_i32 = arith.constant 0 : i32
    %c0_i32_0 = arith.constant 0 : i32
    return %arg0, %c0_i32 : i32, i32
  }
  func.func @transform_1(%arg0: i32) -> (i32, i32) {
    %c0_i32 = arith.constant 0 : i32
    %c0_i32_0 = arith.constant 0 : i32
    %c0_i32_1 = arith.constant 0 : i32
    return %c0_i32, %c0_i32_0 : i32, i32
  }
  func.func @transform_2(%arg0: i32) -> (i32, i32) {
    %c0_i32 = arith.constant 0 : i32
    %c0_i32_0 = arith.constant 0 : i32
    %c0_i32_1 = arith.constant 0 : i32
    return %c0_i32, %c0_i32_0 : i32, i32
  }
  func.func @transform_3(%arg0: i32) -> (i32, i32) {
    %c0_i32 = arith.constant 0 : i32
    %c0_i32_0 = arith.constant 0 : i32
    %c0_i32_1 = arith.constant 0 : i32
    return %c0_i32, %c0_i32_0 : i32, i32
  }
  func.func @transform_4(%arg0: i32) -> (i32, i32) {
    %c0_i32 = arith.constant 0 : i32
    %c0_i32_0 = arith.constant 0 : i32
    %c0_i32_1 = arith.constant 0 : i32
    return %c0_i32, %c0_i32_0 : i32, i32
  }
  func.func @transform_5(%arg0: i32) -> (i32, i32) {
    %c0_i32 = arith.constant 0 : i32
    %c0_i32_0 = arith.constant 0 : i32
    %c0_i32_1 = arith.constant 0 : i32
    return %c0_i32, %c0_i32_0 : i32, i32
  }
  func.func @transform_6(%arg0: i32) -> (i32, i32) {
    %c0_i32 = arith.constant 0 : i32
    %c0_i32_0 = arith.constant 0 : i32
    %c0_i32_1 = arith.constant 0 : i32
    return %c0_i32, %c0_i32_0 : i32, i32
  }
  func.func @transform_7(%arg0: i32) -> (i32, i32) {
    %c0_i32 = arith.constant 0 : i32
    %c0_i32_0 = arith.constant 0 : i32
    return %arg0, %c0_i32 : i32, i32
  }
}

</mosaic_0001>

<llo_original>
// kernel: discriminator_forward.1
$region0: #{discriminator_forward.1}
  #allocation0 [shape = 'u32[]', space=smem, size = 0x4, offset = 0x4, fixed_abs, tag = 'smem constant byte address 0x4 - core index']
  #allocation1 [shape = 'u32[144,128]{1,0:T(1,128)}', space=vmem, size = 0x12000, scoped, tag = 'internal scratch']
  %s0 = inlined_call_operand.hbm [shape: f32[16,32], index: 0, kind: input, shape index: {}]
  %s1 = inlined_call_operand.vmem [shape: f32[32,32], index: 1, kind: input, shape index: {}]
  %s2 = inlined_call_operand.vmem [shape: f32[1,32], index: 2, kind: input, shape index: {}]
  %s3 = inlined_call_operand.vmem [shape: f32[1,32], index: 3, kind: input, shape index: {}]
  %s4 = inlined_call_operand.vmem [shape: f32[1,32], index: 4, kind: input, shape index: {}]
  %s5 = inlined_call_operand.vmem [shape: f32[32,8], index: 5, kind: input, shape index: {}]
  %s6 = inlined_call_operand.vmem [shape: f32[1,8], index: 6, kind: input, shape index: {}]
  %s7 = inlined_call_operand.vmem [shape: f32[16,8], index: 7, kind: output, shape index: {}]
  %s8 = sld [smem:[#allocation0]]
  $region42: #{discriminator_forward.1} parent=0
    _
  %s10 = ssub.s32 1, %s8
  %s11 = scalar_select 0, %s10, %s8
  $region1: #{discriminator_forward.1} parent=0
    #allocation2 [shape = 'u8[8192]{0}', space=vmem, size = 0x2000, scoped, tag = 'input window, operand 0, single buffered']
    #allocation3 [shape = 's32[1]{0}', space=sflag, size = 0x4, scoped, tag = 'scoped memory for discriminator_forward.1']
    %12 = vsyncpa [#allocation3], 0
    // Predicated region
    $region2: #{discriminator_forward.1} parent=1 // pred_check
      _
    $region3: #{discriminator_forward.1} parent=1 // pred_check_branch
      %14 = sbr.rel (0) target = $region5
    $region4: #{discriminator_forward.1} parent=1 // pred_region
      %s16 = ssub.s32 256, 256
      %17 = vsyncadd [#allocation3], %s16
      %s18 = sshll.u32 [#allocation2], 4
      %s19 = int_to_ptr.vmem [resolvable:$true] %s18
      %24 = dma.hbm_to_vmem [thread:$0]  %s0, 256, %s19, [#allocation3], 128, 128, 8
    $region5: #{discriminator_forward.1} parent=1 // pred_fallthru
      _
    // Predicated region
    $region6: #{discriminator_forward.1} parent=1 // pred_check
      _
    $region7: #{discriminator_forward.1} parent=1 // pred_check_branch
      %26 = sbr.rel (0) target = $region9
    $region8: #{discriminator_forward.1} parent=1 // pred_region
      _
    $region9: #{discriminator_forward.1} parent=1 // pred_fallthru
      _
    // Predicated region
    $region10: #{discriminator_forward.1} parent=1 // pred_check
      _
    $region11: #{discriminator_forward.1} parent=1 // pred_check_branch
      %28 = sbr.rel (0) target = $region13
    $region12: #{discriminator_forward.1} parent=1 // pred_region
      _
    $region13: #{discriminator_forward.1} parent=1 // pred_fallthru
      _
    // Predicated region
    $region14: #{discriminator_forward.1} parent=1 // pred_check
      _
    $region15: #{discriminator_forward.1} parent=1 // pred_check_branch
      %30 = sbr.rel (0) target = $region17
    $region16: #{discriminator_forward.1} parent=1 // pred_region
      _
    $region17: #{discriminator_forward.1} parent=1 // pred_fallthru
      _
    // Predicated region
    $region18: #{discriminator_forward.1} parent=1 // pred_check
      _
    $region19: #{discriminator_forward.1} parent=1 // pred_check_branch
      %32 = sbr.rel (0) target = $region21
    $region20: #{discriminator_forward.1} parent=1 // pred_region
      _
    $region21: #{discriminator_forward.1} parent=1 // pred_fallthru
      _
    // Predicated region
    $region22: #{discriminator_forward.1} parent=1 // pred_check
      _
    $region23: #{discriminator_forward.1} parent=1 // pred_check_branch
      %34 = sbr.rel (0) target = $region25
    $region24: #{discriminator_forward.1} parent=1 // pred_region
      _
    $region25: #{discriminator_forward.1} parent=1 // pred_fallthru
      _
    // Predicated region
    $region26: #{discriminator_forward.1} parent=1 // pred_check
      _
    $region27: #{discriminator_forward.1} parent=1 // pred_check_branch
      %36 = sbr.rel (0) target = $region29
    $region28: #{discriminator_forward.1} parent=1 // pred_region
      _
    $region29: #{discriminator_forward.1} parent=1 // pred_fallthru
      _
    // Predicated region
    $region30: #{discriminator_forward.1} parent=1 // pred_check
      _
    $region31: #{discriminator_forward.1} parent=1 // pred_check_branch
      %38 = sbr.rel (0) target = $region33
    $region32: #{discriminator_forward.1} parent=1 // pred_region
      %39 = dma.done [#allocation3], 256
    $region33: #{discriminator_forward.1} parent=1 // pred_fallthru
      _
    %v40 = vld [vmem:[%s1] sm:$0xff]
    %v41 = vld [vmem:[%s1 + $0x8] sm:$0xff]
    %v42 = vld [vmem:[%s1 + $0x10] sm:$0xff]
    %v43 = vld [vmem:[%s1 + $0x18] sm:$0xff]
    %v44 = vld [vmem:[#allocation2] sm:$0xff]
    %v45 = vld [vmem:[#allocation2 + $0x8] sm:$0xff]
    %v46 = vld [vmem:[%s2] sm:$0x1]
    %v48 = vlaneseq
    %v49 = vshrl.u32 %v48, 7
    %v50 = vsub.s32 0, %v49
    %v51 = vrot.slane %v46, %v50
    %vm53 = vcmask 261120
    %v55 = vsel %vm53, %v44, 0
    %v58 = vsel %vm53, %v45, 0
    %60 = vmatprep.subr.mxu0 0.0
    %61 = vmatpush1.msra.mxu0 %v40
    %62 = vmatprep.subr.mxu0 0.0
    %63 = vmatpush1.msra.mxu0 %v41
    %64 = vmatprep.subr.mxu0 0.0
    %65 = vmatpush1.msra.mxu0 %v42
    %66 = vmatprep.subr.mxu0 0.0
    %67 = vmatpush1.msra.mxu0 %v43
    %68 = vmatprep.subr.mxu0 0.0
    %69 = vmatpush1.msra.mxu0 0.0
    %70 = vmatprep.subr.mxu0 0.0
    %71 = vmatpush1.msra.mxu0 0.0
    %72 = vmatprep.subr.mxu0 0.0
    %73 = vmatpush1.msra.mxu0 0.0
    %74 = vmatprep.subr.mxu0 0.0
    %75 = vmatpush1.msra.mxu0 0.0
    %76 = vmatprep.subr.mxu0 0.0
    %77 = vmatpush1.msra.mxu0 0.0
    %78 = vmatprep.subr.mxu0 0.0
    %79 = vmatpush1.msra.mxu0 0.0
    %80 = vmatprep.subr.mxu0 0.0
    %81 = vmatpush1.msra.mxu0 0.0
    %82 = vmatprep.subr.mxu0 0.0
    %83 = vmatpush1.msra.mxu0 0.0
    %84 = vmatprep.subr.mxu0 0.0
    %85 = vmatpush1.msra.mxu0 0.0
    %86 = vmatprep.subr.mxu0 0.0
    %87 = vmatpush1.msra.mxu0 0.0
    %88 = vmatprep.subr.mxu0 0.0
    %89 = vmatpush1.msra.mxu0 0.0
    %90 = vmatprep.subr.mxu0 0.0
    %91 = vmatpush1.msra.mxu0 0.0
    %92 = vmatprep.subr.mxu0 0.0
    %93 = vmatpush1.msra.mxu0 0.0
    %94 = vmatprep.subr.mxu0 0.0
    %95 = vmatpush1.msra.mxu0 0.0
    %96 = vmatprep.subr.mxu0 0.0
    %97 = vmatpush1.msra.mxu0 0.0
    %98 = vmatprep.subr.mxu0 0.0
    %99 = vmatpush1.msra.mxu0 0.0
    %100 = vmatprep.subr.mxu0 0.0
    %101 = vmatpush1.msra.mxu0 0.0
    %102 = vmatprep.subr.mxu0 0.0
    %103 = vmatpush1.msra.mxu0 0.0
    %104 = vmatprep.subr.mxu0 0.0
    %105 = vmatpush1.msra.mxu0 0.0
    %106 = vmatprep.subr.mxu0 0.0
    %107 = vmatpush1.msra.mxu0 0.0
    %108 = vmatprep.subr.mxu0 0.0
    %109 = vmatpush1.msra.mxu0 0.0
    %110 = vmatprep.subr.mxu0 0.0
    %111 = vmatpush1.msra.mxu0 0.0
    %112 = vmatprep.subr.mxu0 0.0
    %113 = vmatpush1.msra.mxu0 0.0
    %114 = vmatprep.subr.mxu0 0.0
    %115 = vmatpush1.msra.mxu0 0.0
    %116 = vmatprep.subr.mxu0 0.0
    %117 = vmatpush1.msra.mxu0 0.0
    %118 = vmatprep.subr.mxu0 0.0
    %119 = vmatpush1.msra.mxu0 0.0
    %120 = vmatprep.subr.mxu0 0.0
    %121 = vmatpush1.msra.mxu0 0.0
    %122 = vmatprep.subr.mxu0 0.0
    %123 = vmatpush1.msra.mxu0 0.0
    %124 = vmatprep.mubr.f32.mxu0 0.0
    %125 = vmatmul.mubr.f32.gmra.mrb[0].mxu0 %v55
    %v126 = vpop.f32.mrb[0].mxu0
    %v127 = vadd.f32 %v51, %v126
    %v128 = vpop.f32.mrb[0].mxu0
    %129 = vmatprep.mubr.f32.mxu0 0.0
    %130 = vmatmul.mubr.f32.gmra.mrb[0].mxu0 %v58
    %v131 = vpop.f32.mrb[0].mxu0
    %v132 = vadd.f32 %v51, %v131
    %v133 = vpop.f32.mrb[0].mxu0
    %134 = vdwg.mxu0
    %v135 = vsel %vm53, %v127, 0.0
    %136 = vadd.xlane.f32.xlu0 %v135
    %v137 = vpop.xlane.xlu0 %136
    %v138 = vsel %vm53, %v132, 0.0
    %139 = vadd.xlane.f32.xlu0 %v138
    %v140 = vpop.xlane.xlu0 %139
    %v141 = vmul.f32 %v137, 0.03125
    %v142 = vmul.f32 %v140, 0.03125
    %v143 = vmul.f32 %v127, %v127
    %v144 = vmul.f32 %v132, %v132
    %v145 = vsel %vm53, %v143, 0.0
    %146 = vadd.xlane.f32.xlu0 %v145
    %v147 = vpop.xlane.xlu0 %146
    %v148 = vsel %vm53, %v144, 0.0
    %149 = vadd.xlane.f32.xlu0 %v148
    %v150 = vpop.xlane.xlu0 %149
    %v151 = vmul.f32 %v147, 0.03125
    %v152 = vmul.f32 %v150, 0.03125
    %v153 = vmul.f32 %v141, %v141
    %v154 = vmul.f32 %v142, %v142
    %v155 = vsub.f32 %v151, %v153
    %v156 = vsub.f32 %v152, %v154
    %v157 = vmax.f32 %v155, 0.0
    %v158 = vmax.f32 %v156, 0.0
    %v159 = vsub.f32 %v127, %v141
    %v160 = vsub.f32 %v132, %v142
    %v161 = vadd.f32 %v157, 1e-05
    %v162 = vadd.f32 %v158, 1e-05
    %v163 = vrsqrt.pop %v161
    %v164 = vrsqrt.pop %v162
    %v165 = vmul.f32 %v159, %v163
    %v166 = vmul.f32 %v160, %v164
    %v167 = vld [vmem:[%s3] sm:$0x1]
    %v169 = vlaneseq
    %v170 = vshrl.u32 %v169, 7
    %v171 = vsub.s32 0, %v170
    %v172 = vrot.slane %v167, %v171
    %v174 = vmul.f32 %v165, %v172
    %v175 = vmul.f32 %v166, %v172
    %v176 = vld [vmem:[%s4] sm:$0x1]
    %v178 = vlaneseq
    %v179 = vshrl.u32 %v178, 7
    %v180 = vsub.s32 0, %v179
    %v181 = vrot.slane %v176, %v180
    %v183 = vadd.f32 %v174, %v181
    %v184 = vadd.f32 %v175, %v181
    %v185 = vmax.f32 %v183, 0.0
    %v186 = vmax.f32 %v184, 0.0
    %v187 = vld [vmem:[%s5] sm:$0xff]
    %v188 = vld [vmem:[%s5 + $0x8] sm:$0xff]
    %v189 = vld [vmem:[%s5 + $0x10] sm:$0xff]
    %v190 = vld [vmem:[%s5 + $0x18] sm:$0xff]
    %v191 = vld [vmem:[%s6] sm:$0x1]
    %v193 = vlaneseq
    %v194 = vshrl.u32 %v193, 7
    %v195 = vsub.s32 0, %v194
    %v196 = vrot.slane %v191, %v195
    %v199 = vsel %vm53, %v185, 0
    %v202 = vsel %vm53, %v186, 0
    %204 = vmatprep.subr.mxu0 0.0
    %205 = vmatpush1.msra.mxu0 %v187
    %206 = vmatprep.subr.mxu0 0.0
    %207 = vmatpush1.msra.mxu0 %v188
    %208 = vmatprep.subr.mxu0 0.0
    %209 = vmatpush1.msra.mxu0 %v189
    %210 = vmatprep.subr.mxu0 0.0
    %211 = vmatpush1.msra.mxu0 %v190
    %212 = vmatprep.subr.mxu0 0.0
    %213 = vmatpush1.msra.mxu0 0.0
    %214 = vmatprep.subr.mxu0 0.0
    %215 = vmatpush1.msra.mxu0 0.0
    %216 = vmatprep.subr.mxu0 0.0
    %217 = vmatpush1.msra.mxu0 0.0
    %218 = vmatprep.subr.mxu0 0.0
    %219 = vmatpush1.msra.mxu0 0.0
    %220 = vmatprep.subr.mxu0 0.0
    %221 = vmatpush1.msra.mxu0 0.0
    %222 = vmatprep.subr.mxu0 0.0
    %223 = vmatpush1.msra.mxu0 0.0
    %224 = vmatprep.subr.mxu0 0.0
    %225 = vmatpush1.msra.mxu0 0.0
    %226 = vmatprep.subr.mxu0 0.0
    %227 = vmatpush1.msra.mxu0 0.0
    %228 = vmatprep.subr.mxu0 0.0
    %229 = vmatpush1.msra.mxu0 0.0
    %230 = vmatprep.subr.mxu0 0.0
    %231 = vmatpush1.msra.mxu0 0.0
    %232 = vmatprep.subr.mxu0 0.0
    %233 = vmatpush1.msra.mxu0 0.0
    %234 = vmatprep.subr.mxu0 0.0
    %235 = vmatpush1.msra.mxu0 0.0
    %236 = vmatprep.subr.mxu0 0.0
    %237 = vmatpush1.msra.mxu0 0.0
    %238 = vmatprep.subr.mxu0 0.0
    %239 = vmatpush1.msra.mxu0 0.0
    %240 = vmatprep.subr.mxu0 0.0
    %241 = vmatpush1.msra.mxu0 0.0
    %242 = vmatprep.subr.mxu0 0.0
    %243 = vmatpush1.msra.mxu0 0.0
    %244 = vmatprep.subr.mxu0 0.0
    %245 = vmatpush1.msra.mxu0 0.0
    %246 = vmatprep.subr.mxu0 0.0
    %247 = vmatpush1.msra.mxu0 0.0
    %248 = vmatprep.subr.mxu0 0.0
    %249 = vmatpush1.msra.mxu0 0.0
    %250 = vmatprep.subr.mxu0 0.0
    %251 = vmatpush1.msra.mxu0 0.0
    %252 = vmatprep.subr.mxu0 0.0
    %253 = vmatpush1.msra.mxu0 0.0
    %254 = vmatprep.subr.mxu0 0.0
    %255 = vmatpush1.msra.mxu0 0.0
    %256 = vmatprep.subr.mxu0 0.0
    %257 = vmatpush1.msra.mxu0 0.0
    %258 = vmatprep.subr.mxu0 0.0
    %259 = vmatpush1.msra.mxu0 0.0
    %260 = vmatprep.subr.mxu0 0.0
    %261 = vmatpush1.msra.mxu0 0.0
    %262 = vmatprep.subr.mxu0 0.0
    %263 = vmatpush1.msra.mxu0 0.0
    %264 = vmatprep.subr.mxu0 0.0
    %265 = vmatpush1.msra.mxu0 0.0
    %266 = vmatprep.subr.mxu0 0.0
    %267 = vmatpush1.msra.mxu0 0.0
    %268 = vmatprep.mubr.f32.mxu0 0.0
    %269 = vmatmul.mubr.f32.gmra.mrb[0].mxu0 %v199
    %v270 = vpop.f32.mrb[0].mxu0
    %v271 = vadd.f32 %v196, %v270
    %v272 = vpop.f32.mrb[0].mxu0
    %273 = vmatprep.mubr.f32.mxu0 0.0
    %274 = vmatmul.mubr.f32.gmra.mrb[0].mxu0 %v202
    %v275 = vpop.f32.mrb[0].mxu0
    %v276 = vadd.f32 %v196, %v275
    %v277 = vpop.f32.mrb[0].mxu0
    %278 = vdwg.mxu0
    %vm279 = vcmask 64512
    %280 = vst.msk [vmem:[%s7] sm:$0xff] %vm279, %v271
    %281 = vst.msk [vmem:[%s7 + $0x8] sm:$0xff] %vm279, %v276
    // Predicated region
    $region34: #{discriminator_forward.1} parent=1 // pred_check
      _
    $region35: #{discriminator_forward.1} parent=1 // pred_check_branch
      %283 = sbr.rel (0) target = $region37
    $region36: #{discriminator_forward.1} parent=1 // pred_region
      _
    $region37: #{discriminator_forward.1} parent=1 // pred_fallthru
      _
    // Predicated region
    $region38: #{discriminator_forward.1} parent=1 // pred_check
      _
    $region39: #{discriminator_forward.1} parent=1 // pred_check_branch
      %285 = sbr.rel (0) target = $region41
    $region40: #{discriminator_forward.1} parent=1 // pred_region
      _
    $region41: #{discriminator_forward.1} parent=1 // pred_fallthru
      _
    %286 = vsyncpa [#allocation3], 1

</llo_original>
